<compile_context>
chip_gen: v6e
topology: v6e:2x2x1
jax: 0.10.0
libtpu: 0.0.40
codegen_flags: <defaults>
</compile_context>

<pallas_src>
import functools

import numpy as np
import jax
import jax.numpy as jnp
from jax.experimental import pallas as pl
from jax.experimental.pallas import tpu as pltpu


def _round_up(x, m):
    return ((x + m - 1) // m) * m


def _las_kernel(x_ref, tgt_ref, sm_ref, out_ref,
                m_sc, l_sc, sx_sc, xt_sc,
                *, n_true, c_true, block_rows, block_cols):
    i = pl.program_id(0)          # batch tile index ("parallel")
    j = pl.program_id(1)          # class tile index (reduction, innermost)
    nc = pl.num_programs(1)

    @pl.when(j == 0)
    def _():
        m_sc[...] = jnp.full((block_rows, 1), -jnp.inf, jnp.float32)
        l_sc[...] = jnp.zeros((block_rows, 1), jnp.float32)
        sx_sc[...] = jnp.zeros((block_rows, 1), jnp.float32)
        xt_sc[...] = jnp.zeros((block_rows, 1), jnp.float32)

    x = x_ref[...].astype(jnp.float32)        # upcast in-kernel (bf16 on wire)
    tgt = tgt_ref[...]                        # (TM, 1) int32

    # Global class indices for this class tile.
    gcls = j * block_cols + jax.lax.broadcasted_iota(
        jnp.int32, (block_rows, block_cols), 1)
    col_valid = gcls < c_true

    # Online logsumexp over the class axis (padded cols are -1e30 -> exp == 0).
    m_old = m_sc[...]
    m_new = jnp.maximum(m_old, jnp.max(x, axis=-1, keepdims=True))
    l_sc[...] = l_sc[...] * jnp.exp(m_old - m_new) + jnp.sum(
        jnp.exp(x - m_new), axis=-1, keepdims=True)
    m_sc[...] = m_new

    # Running sum of logits over the *true* classes only.
    sx_sc[...] += jnp.sum(jnp.where(col_valid, x, 0.0), axis=-1, keepdims=True)

    # x[target] picked via one-hot compare on global class ids.
    onehot = gcls == tgt
    xt_sc[...] += jnp.sum(jnp.where(onehot, x, 0.0), axis=-1, keepdims=True)

    @pl.when(j == nc - 1)
    def _():
        lse = m_sc[...] + jnp.log(l_sc[...])            # (TM, 1) logsumexp
        nll = lse - xt_sc[...]                          # -logprobs[target]
        smooth_loss = lse - sx_sc[...] / c_true         # -mean(logprobs)
        smoothing = sm_ref[...]                         # smooth[target]
        loss = (1.0 - smoothing) * nll + smoothing * smooth_loss
        rows = i * block_rows + jax.lax.broadcasted_iota(
            jnp.int32, (block_rows, 1), 0)
        loss = jnp.where(rows < n_true, loss, 0.0)      # mask padded rows
        out_ref[...] = jnp.sum(loss).reshape(1, 1, 1)   # partial sum of tile i


def label_aware_smoothing_loss(x, target, smooth, *,
                               block_rows=256, max_block_cols=2048):
    """x: (N, C) float (f32 or bf16), target: (N,) int, smooth: (C,) -> scalar f32."""
    n, c = x.shape
    target = target.astype(jnp.int32)
    smooth = smooth.astype(jnp.float32)

    # Per-row smoothing: cheap length-N gather done outside the kernel.
    smoothing_rows = smooth[target].reshape(n, 1)

    # Lane-dense class tiling (class tile multiple of 128), sublane-aligned rows.
    lane, sublane = 128, 8
    tc = min(_round_up(c, lane), _round_up(max_block_cols, lane))
    c_pad = _round_up(c, tc)
    tm = min(_round_up(n, sublane), _round_up(block_rows, sublane))
    n_pad = _round_up(n, tm)
    nb, ncls = n_pad // tm, c_pad // tc

    xp = x
    if c_pad > c:   # pad classes with a large negative -> exp() underflows to 0
        xp = jnp.concatenate(
            [xp, jnp.full((n, c_pad - c), -1e30, dtype=x.dtype)], axis=1)
    if n_pad > n:   # pad rows with zeros; they are masked out in the kernel
        xp = jnp.concatenate(
            [xp, jnp.zeros((n_pad - n, c_pad), dtype=x.dtype)], axis=0)
    tgtp = jnp.concatenate(
        [target.reshape(n, 1), jnp.zeros((n_pad - n, 1), jnp.int32)], axis=0)
    smp = jnp.concatenate(
        [smoothing_rows, jnp.zeros((n_pad - n, 1), jnp.float32)], axis=0)

    kernel = functools.partial(_las_kernel, n_true=n, c_true=c,
                               block_rows=tm, block_cols=tc)

    partials = pl.pallas_call(
        kernel,
        out_shape=jax.ShapeDtypeStruct((nb, 1, 1), jnp.float32),
        grid_spec=pltpu.PrefetchScalarGridSpec(
            num_scalar_prefetch=0,
            grid=(nb, ncls),
            in_specs=[
                pl.BlockSpec((tm, tc), lambda i, j: (i, j)),
                pl.BlockSpec((tm, 1), lambda i, j: (i, 0)),
                pl.BlockSpec((tm, 1), lambda i, j: (i, 0)),
            ],
            out_specs=pl.BlockSpec((1, 1, 1), lambda i, j: (i, 0, 0)),
            scratch_shapes=[
                pltpu.VMEM((tm, 1), jnp.float32),   # running max
                pltpu.VMEM((tm, 1), jnp.float32),   # running sum-exp
                pltpu.VMEM((tm, 1), jnp.float32),   # running sum(x)
                pltpu.VMEM((tm, 1), jnp.float32),   # x[target]
            ],
        ),
        # Batch tiles are independent ("parallel", megacore on v7x); the class
        # axis is an online reduction ("arbitrary", innermost).
        compiler_params=pltpu.CompilerParams(
            dimension_semantics=("parallel", "arbitrary")),
        # TODO(synk): raise vmem_limit_bytes when choosing larger tiles on v6e.
    )(xp, tgtp, smp)

    return jnp.sum(partials) / n


def make_smooth(cls_num_list, smooth_head=0.2, smooth_tail=0.0,
                shape="concave", power=None):
    """Deterministic per-class smoothing vector (mirrors the PyTorch __init__)."""
    cls = np.array(cls_num_list, dtype=np.float64)
    n_1, n_K = cls.max(), cls.min()
    if shape == "concave":
        s = smooth_tail + (smooth_head - smooth_tail) * np.sin(
            (cls - n_K) * np.pi / (2 * (n_1 - n_K)))
    elif shape == "linear":
        s = smooth_tail + (smooth_head - smooth_tail) * (cls - n_K) / (n_1 - n_K)
    elif shape == "convex":
        s = smooth_head + (smooth_head - smooth_tail) * np.sin(
            1.5 * np.pi + (cls - n_K) * np.pi / (2 * (n_1 - n_K)))
    elif shape == "exp" and power is not None:
        s = smooth_tail + (smooth_head - smooth_tail) * np.power(
            (cls - n_K) / (n_1 - n_K), power)
    else:
        raise ValueError("unsupported shape")
    return jnp.asarray(s.astype(np.float32))


def reference_loss(x, target, smooth):
    """Pure-JAX reference for sanity checking."""
    x = x.astype(jnp.float32)
    smoothing = smooth[target]
    confidence = 1.0 - smoothing
    logprobs = jax.nn.log_softmax(x, axis=-1)
    nll = -jnp.take_along_axis(logprobs, target[:, None], axis=-1)[:, 0]
    smooth_loss = -jnp.mean(logprobs, axis=-1)
    return jnp.mean(confidence * nll + smoothing * smooth_loss)


def _check(x, target, smooth, atol, **kw):
    got = jax.block_until_ready(label_aware_smoothing_loss(x, target, smooth, **kw))
    want = jax.block_until_ready(reference_loss(x, target, smooth))
    assert np.allclose(np.asarray(got), np.asarray(want),
                       rtol=1e-4, atol=atol), (got, want)


if __name__ == "__main__":
    key = jax.random.PRNGKey(0)

    # Case 1: small, non-aligned N and C (exercises row + class padding/masking).
    n, c = 12, 20
    smooth = make_smooth([int(500 * (0.7 ** i)) + 1 for i in range(c)])
    k1, k2, key = jax.random.split(key, 3)
    x = jax.random.normal(k1, (n, c), dtype=jnp.float32)
    tgt = jax.random.randint(k2, (n,), 0, c, dtype=jnp.int32)
    _check(x, tgt, smooth, atol=1e-5)

    # Case 2: multiple batch tiles AND class tiles (online logsumexp path).
    n, c = 24, 300
    smooth = make_smooth([int(2000 * (0.97 ** i)) + 1 for i in range(c)],
                         shape="linear")
    k1, k2, key = jax.random.split(key, 3)
    x = jax.random.normal(k1, (n, c), dtype=jnp.float32) * 3.0
    tgt = jax.random.randint(k2, (n,), 0, c, dtype=jnp.int32)
    _check(x, tgt, smooth, atol=1e-5, block_rows=8, max_block_cols=128)

    # Case 3: bf16 logits on the wire (upcast inside the kernel).
    n, c = 16, 128
    smooth = make_smooth([int(800 * (0.9 ** i)) + 1 for i in range(c)],
                         shape="concave")
    k1, k2, key = jax.random.split(key, 3)
    x = jax.random.normal(k1, (n, c), dtype=jnp.float32).astype(jnp.bfloat16)
    tgt = jax.random.randint(k2, (n,), 0, c, dtype=jnp.int32)
    _check(x, tgt, smooth, atol=1e-4)

    print("KERNEL_OK")
</pallas_src>

<mosaic_0001>
module attributes {stable_mosaic.version = 11 : i64} {
  func.func @_las_kernel(%arg0: i32, %arg1: i32, %arg2: memref<16x128xf32, #tpu.memory_space<vmem>>, %arg3: memref<16x1xi32, #tpu.memory_space<vmem>>, %arg4: memref<16x1xf32, #tpu.memory_space<vmem>>, %arg5: memref<1x1x1xf32, #tpu.memory_space<vmem>>, %arg6: memref<16x1xf32, #tpu.memory_space<vmem>>, %arg7: memref<16x1xf32, #tpu.memory_space<vmem>>, %arg8: memref<16x1xf32, #tpu.memory_space<vmem>>, %arg9: memref<16x1xf32, #tpu.memory_space<vmem>>) attributes {dimension_semantics = [#tpu.dimension_semantics<parallel>, #tpu.dimension_semantics<arbitrary>], iteration_bounds = array<i64: 1, 1>, scalar_prefetch = 0 : i64, scratch_operands = 4 : i64, tpu.core_type = #tpu.core_type<tc>, window_params = [{transform_indices = @transform_0, window_bounds = array<i64: 16, 128>}, {transform_indices = @transform_1, window_bounds = array<i64: 16, 1>}, {transform_indices = @transform_2, window_bounds = array<i64: 16, 1>}, {transform_indices = @transform_3, window_bounds = array<i64: 1, 1, 1>}]} {
    %c0_i32 = arith.constant 0 : i32
    %0 = arith.cmpi eq, %arg1, %c0_i32 : i32
    %1 = arith.extui %0 : i1 to i32
    %c0_i32_0 = arith.constant 0 : i32
    %2 = arith.cmpi ne, %1, %c0_i32_0 : i32
    scf.if %2 {
      %cst_27 = arith.constant 0xFF800000 : f32
      %46 = vector.broadcast %cst_27 : f32 to vector<16x1xf32>
      %c0_28 = arith.constant 0 : index
      %c0_29 = arith.constant 0 : index
      %47 = vector.load %arg6[%c0_28, %c0_29] : memref<16x1xf32, #tpu.memory_space<vmem>>, vector<16x1xf32>
      tpu.vector_store %arg6[%c0_28, %c0_29], %46 {strides = array<i32>} : memref<16x1xf32, #tpu.memory_space<vmem>>, vector<16x1xf32>,
      %cst_30 = arith.constant 0.000000e+00 : f32
      %48 = vector.broadcast %cst_30 : f32 to vector<16x1xf32>
      %c0_31 = arith.constant 0 : index
      %c0_32 = arith.constant 0 : index
      %49 = vector.load %arg7[%c0_31, %c0_32] : memref<16x1xf32, #tpu.memory_space<vmem>>, vector<16x1xf32>
      tpu.vector_store %arg7[%c0_31, %c0_32], %48 {strides = array<i32>} : memref<16x1xf32, #tpu.memory_space<vmem>>, vector<16x1xf32>,
      %cst_33 = arith.constant 0.000000e+00 : f32
      %50 = vector.broadcast %cst_33 : f32 to vector<16x1xf32>
      %c0_34 = arith.constant 0 : index
      %c0_35 = arith.constant 0 : index
      %51 = vector.load %arg8[%c0_34, %c0_35] : memref<16x1xf32, #tpu.memory_space<vmem>>, vector<16x1xf32>
      tpu.vector_store %arg8[%c0_34, %c0_35], %50 {strides = array<i32>} : memref<16x1xf32, #tpu.memory_space<vmem>>, vector<16x1xf32>,
      %cst_36 = arith.constant 0.000000e+00 : f32
      %52 = vector.broadcast %cst_36 : f32 to vector<16x1xf32>
      %c0_37 = arith.constant 0 : index
      %c0_38 = arith.constant 0 : index
      %53 = vector.load %arg9[%c0_37, %c0_38] : memref<16x1xf32, #tpu.memory_space<vmem>>, vector<16x1xf32>
      tpu.vector_store %arg9[%c0_37, %c0_38], %52 {strides = array<i32>} : memref<16x1xf32, #tpu.memory_space<vmem>>, vector<16x1xf32>,
    } else {
    }
    %c0 = arith.constant 0 : index
    %c0_1 = arith.constant 0 : index
    %3 = vector.load %arg2[%c0, %c0_1] : memref<16x128xf32, #tpu.memory_space<vmem>>, vector<16x128xf32>
    %c0_2 = arith.constant 0 : index
    %c0_3 = arith.constant 0 : index
    %4 = vector.load %arg3[%c0_2, %c0_3] : memref<16x1xi32, #tpu.memory_space<vmem>>, vector<16x1xi32>
    %c128_i32 = arith.constant 128 : i32
    %5 = arith.muli %arg1, %c128_i32 : i32
    %6 = tpu.iota {dimensions = array<i32: 1>} : vector<16x128xi32>
    %7 = vector.broadcast %5 : i32 to vector<16x128xi32>
    %8 = arith.addi %7, %6 : vector<16x128xi32>
    %c20_i32 = arith.constant 20 : i32
    %9 = vector.broadcast %c20_i32 : i32 to vector<16x128xi32>
    %10 = arith.cmpi slt, %8, %9 : vector<16x128xi32>
    %c0_4 = arith.constant 0 : index
    %c0_5 = arith.constant 0 : index
    %11 = vector.load %arg6[%c0_4, %c0_5] : memref<16x1xf32, #tpu.memory_space<vmem>>, vector<16x1xf32>
    %cst = arith.constant dense<0xFF800000> : vector<16xf32>
    %12 = vector.multi_reduction <maximumf>, %3, %cst [1] : vector<16x128xf32> to vector<16xf32>
    %13 = vector.shape_cast %12 : vector<16xf32> to vector<16x1xf32>
    %14 = arith.maximumf %11, %13 : vector<16x1xf32>
    %c0_6 = arith.constant 0 : index
    %c0_7 = arith.constant 0 : index
    %15 = vector.load %arg7[%c0_6, %c0_7] : memref<16x1xf32, #tpu.memory_space<vmem>>, vector<16x1xf32>
    %16 = arith.subf %11, %14 : vector<16x1xf32>
    %17 = math.exp %16 : vector<16x1xf32>
    %18 = arith.mulf %15, %17 : vector<16x1xf32>
    %19 = vector.broadcast %14 : vector<16x1xf32> to vector<16x128xf32>
    %20 = arith.subf %3, %19 : vector<16x128xf32>
    %21 = math.exp %20 : vector<16x128xf32>
    %cst_8 = arith.constant dense<0.000000e+00> : vector<16xf32>
    %22 = vector.multi_reduction <add>, %21, %cst_8 [1] : vector<16x128xf32> to vector<16xf32>
    %23 = vector.shape_cast %22 : vector<16xf32> to vector<16x1xf32>
    %24 = arith.addf %18, %23 : vector<16x1xf32>
    %c0_9 = arith.constant 0 : index
    %c0_10 = arith.constant 0 : index
    %25 = vector.load %arg7[%c0_9, %c0_10] : memref<16x1xf32, #tpu.memory_space<vmem>>, vector<16x1xf32>
    tpu.vector_store %arg7[%c0_9, %c0_10], %24 {strides = array<i32>} : memref<16x1xf32, #tpu.memory_space<vmem>>, vector<16x1xf32>,
    %c0_11 = arith.constant 0 : index
    %c0_12 = arith.constant 0 : index
    %26 = vector.load %arg6[%c0_11, %c0_12] : memref<16x1xf32, #tpu.memory_space<vmem>>, vector<16x1xf32>
    tpu.vector_store %arg6[%c0_11, %c0_12], %14 {strides = array<i32>} : memref<16x1xf32, #tpu.memory_space<vmem>>, vector<16x1xf32>,
    %c0_13 = arith.constant 0 : index
    %c0_14 = arith.constant 0 : index
    %27 = vector.load %arg8[%c0_13, %c0_14] : memref<16x1xf32, #tpu.memory_space<vmem>>, vector<16x1xf32>
    %cst_15 = arith.constant 0.000000e+00 : f32
    %28 = vector.broadcast %cst_15 : f32 to vector<16x128xf32>
    %29 = arith.select %10, %3, %28 : vector<16x128xi1>, vector<16x128xf32>
    %cst_16 = arith.constant dense<0.000000e+00> : vector<16xf32>
    %30 = vector.multi_reduction <add>, %29, %cst_16 [1] : vector<16x128xf32> to vector<16xf32>
    %31 = vector.shape_cast %30 : vector<16xf32> to vector<16x1xf32>
    %32 = arith.addf %27, %31 : vector<16x1xf32>
    %c0_17 = arith.constant 0 : index
    %c0_18 = arith.constant 0 : index
    %33 = vector.load %arg8[%c0_17, %c0_18] : memref<16x1xf32, #tpu.memory_space<vmem>>, vector<16x1xf32>
    tpu.vector_store %arg8[%c0_17, %c0_18], %32 {strides = array<i32>} : memref<16x1xf32, #tpu.memory_space<vmem>>, vector<16x1xf32>,
    %34 = vector.broadcast %4 : vector<16x1xi32> to vector<16x128xi32>
    %35 = arith.cmpi eq, %8, %34 : vector<16x128xi32>
    %c0_19 = arith.constant 0 : index
    %c0_20 = arith.constant 0 : index
    %36 = vector.load %arg9[%c0_19, %c0_20] : memref<16x1xf32, #tpu.memory_space<vmem>>, vector<16x1xf32>
    %cst_21 = arith.constant 0.000000e+00 : f32
    %37 = vector.broadcast %cst_21 : f32 to vector<16x128xf32>
    %38 = arith.select %35, %3, %37 : vector<16x128xi1>, vector<16x128xf32>
    %cst_22 = arith.constant dense<0.000000e+00> : vector<16xf32>
    %39 = vector.multi_reduction <add>, %38, %cst_22 [1] : vector<16x128xf32> to vector<16xf32>
    %40 = vector.shape_cast %39 : vector<16xf32> to vector<16x1xf32>
    %41 = arith.addf %36, %40 : vector<16x1xf32>
    %c0_23 = arith.constant 0 : index
    %c0_24 = arith.constant 0 : index
    %42 = vector.load %arg9[%c0_23, %c0_24] : memref<16x1xf32, #tpu.memory_space<vmem>>, vector<16x1xf32>
    tpu.vector_store %arg9[%c0_23, %c0_24], %41 {strides = array<i32>} : memref<16x1xf32, #tpu.memory_space<vmem>>, vector<16x1xf32>,
    %c0_i32_25 = arith.constant 0 : i32
    %43 = arith.cmpi eq, %arg1, %c0_i32_25 : i32
    %44 = arith.extui %43 : i1 to i32
    %c0_i32_26 = arith.constant 0 : i32
    %45 = arith.cmpi ne, %44, %c0_i32_26 : i32
    scf.if %45 {
      %c0_27 = arith.constant 0 : index
      %c0_28 = arith.constant 0 : index
      %46 = vector.load %arg6[%c0_27, %c0_28] : memref<16x1xf32, #tpu.memory_space<vmem>>, vector<16x1xf32>
      %c0_29 = arith.constant 0 : index
      %c0_30 = arith.constant 0 : index
      %47 = vector.load %arg7[%c0_29, %c0_30] : memref<16x1xf32, #tpu.memory_space<vmem>>, vector<16x1xf32>
      %48 = math.log %47 : vector<16x1xf32>
      %49 = arith.addf %46, %48 : vector<16x1xf32>
      %c0_31 = arith.constant 0 : index
      %c0_32 = arith.constant 0 : index
      %50 = vector.load %arg9[%c0_31, %c0_32] : memref<16x1xf32, #tpu.memory_space<vmem>>, vector<16x1xf32>
      %51 = arith.subf %49, %50 : vector<16x1xf32>
      %c0_33 = arith.constant 0 : index
      %c0_34 = arith.constant 0 : index
      %52 = vector.load %arg8[%c0_33, %c0_34] : memref<16x1xf32, #tpu.memory_space<vmem>>, vector<16x1xf32>
      %cst_35 = arith.constant 2.000000e+01 : f32
      %53 = vector.broadcast %cst_35 : f32 to vector<16x1xf32>
      %54 = arith.divf %52, %53 : vector<16x1xf32>
      %55 = arith.subf %49, %54 : vector<16x1xf32>
      %c0_36 = arith.constant 0 : index
      %c0_37 = arith.constant 0 : index
      %56 = vector.load %arg4[%c0_36, %c0_37] : memref<16x1xf32, #tpu.memory_space<vmem>>, vector<16x1xf32>
      %cst_38 = arith.constant 1.000000e+00 : f32
      %57 = vector.broadcast %cst_38 : f32 to vector<16x1xf32>
      %58 = arith.subf %57, %56 : vector<16x1xf32>
      %59 = arith.mulf %58, %51 : vector<16x1xf32>
      %60 = arith.mulf %56, %55 : vector<16x1xf32>
      %61 = arith.addf %59, %60 : vector<16x1xf32>
      %c16_i32 = arith.constant 16 : i32
      %62 = arith.muli %arg0, %c16_i32 : i32
      %63 = tpu.iota {dimensions = array<i32: 0>} : vector<16x1xi32>
      %64 = vector.broadcast %62 : i32 to vector<16x1xi32>
      %65 = arith.addi %64, %63 : vector<16x1xi32>
      %c12_i32 = arith.constant 12 : i32
      %66 = vector.broadcast %c12_i32 : i32 to vector<16x1xi32>
      %67 = arith.cmpi slt, %65, %66 : vector<16x1xi32>
      %cst_39 = arith.constant 0.000000e+00 : f32
      %68 = vector.broadcast %cst_39 : f32 to vector<16x1xf32>
      %69 = arith.select %67, %61, %68 : vector<16x1xi1>, vector<16x1xf32>
      %70 = vector.shape_cast %69 : vector<16x1xf32> to vector<1x16x1xf32>
      %cst_40 = arith.constant dense<0.000000e+00> : vector<1xf32>
      %71 = vector.multi_reduction <add>, %70, %cst_40 [1, 2] : vector<1x16x1xf32> to vector<1xf32>
      %72 = vector.shape_cast %71 : vector<1xf32> to vector<1x1x1xf32>
      %73 = vector.extract %72[0, 0, 0] : f32 from vector<1x1x1xf32>
      %74 = vector.broadcast %73 : f32 to vector<1x1x1xf32>
      %c0_41 = arith.constant 0 : index
      %c0_42 = arith.constant 0 : index
      %c0_43 = arith.constant 0 : index
      %75 = vector.load %arg5[%c0_41, %c0_42, %c0_43] : memref<1x1x1xf32, #tpu.memory_space<vmem>>, vector<1x1x1xf32>
      tpu.vector_store %arg5[%c0_41, %c0_42, %c0_43], %74 {strides = array<i32>} : memref<1x1x1xf32, #tpu.memory_space<vmem>>, vector<1x1x1xf32>,
    } else {
    }
    return
  }
  func.func @transform_0(%arg0: i32, %arg1: i32) -> (i32, i32) {
    %c0_i32 = arith.constant 0 : i32
    return %arg0, %arg1 : i32, i32
  }
  func.func @transform_1(%arg0: i32, %arg1: i32) -> (i32, i32) {
    %c0_i32 = arith.constant 0 : i32
    %c0_i32_0 = arith.constant 0 : i32
    return %arg0, %c0_i32 : i32, i32
  }
  func.func @transform_2(%arg0: i32, %arg1: i32) -> (i32, i32) {
    %c0_i32 = arith.constant 0 : i32
    %c0_i32_0 = arith.constant 0 : i32
    return %arg0, %c0_i32 : i32, i32
  }
  func.func @transform_3(%arg0: i32, %arg1: i32) -> (i32, i32, i32) {
    %c0_i32 = arith.constant 0 : i32
    %c0_i32_0 = arith.constant 0 : i32
    %c0_i32_1 = arith.constant 0 : i32
    return %arg0, %c0_i32, %c0_i32_0 : i32, i32, i32
  }
}

</mosaic_0001>

<llo_original>
// kernel: tpu_custom_call.1
$region0: #{tpu_custom_call.1}
  #allocation0 [shape = 'u32[]', space=smem, size = 0x4, offset = 0x4, fixed_abs, tag = 'smem constant byte address 0x4 - core index']
  #allocation1 [shape = 'u32[144,128]{1,0:T(1,128)}', space=vmem, size = 0x12000, scoped, tag = 'internal scratch']
  #allocation2 [shape = 'f32[16,1]{1,0:T(8,128)}', space=vmem, size = 0x2000, scoped, tag = 'scratch operand']
  #allocation3 [shape = 'f32[16,1]{1,0:T(8,128)}', space=vmem, size = 0x2000, scoped, tag = 'scratch operand']
  #allocation4 [shape = 'f32[16,1]{1,0:T(8,128)}', space=vmem, size = 0x2000, scoped, tag = 'scratch operand']
  #allocation5 [shape = 'f32[16,1]{1,0:T(8,128)}', space=vmem, size = 0x2000, scoped, tag = 'scratch operand']
  %s0 = inlined_call_operand.vmem [shape: f32[16,128], index: 0, kind: input, shape index: {}]
  %s1 = inlined_call_operand.vmem [shape: s32[16,1], index: 1, kind: input, shape index: {}]
  %s2 = inlined_call_operand.vmem [shape: f32[16,1], index: 2, kind: input, shape index: {}]
  %s3 = inlined_call_operand.hbm [shape: f32[1,1,1], index: 3, kind: output, shape index: {}]
  %s4 = sld [smem:[#allocation0]]
  $region30: #{tpu_custom_call.1} parent=0
    _
  %s6 = ssub.s32 1, %s4
  %s7 = scalar_select 0, %s6, %s4
  $region1: #{tpu_custom_call.1} parent=0
    #allocation6 [shape = 'u8[512]{0}', space=vmem, size = 0x400, scoped, tag = 'output window, operand 0, single buffered']
    #allocation7 [shape = 's32[1]{0}', space=sflag, size = 0x4, scoped, tag = 'scoped memory for tpu_custom_call.1']
    %8 = vsyncpa [#allocation7], 0
    // Predicated region
    $region2: #{tpu_custom_call.1} parent=1 // pred_check
      _
    $region3: #{tpu_custom_call.1} parent=1 // pred_check_branch
      %10 = sbr.rel (0) target = $region5
    $region4: #{tpu_custom_call.1} parent=1 // pred_region
      _
    $region5: #{tpu_custom_call.1} parent=1 // pred_fallthru
      _
    // Predicated region
    $region6: #{tpu_custom_call.1} parent=1 // pred_check
      _
    $region7: #{tpu_custom_call.1} parent=1 // pred_check_branch
      %12 = sbr.rel (0) target = $region9
    $region8: #{tpu_custom_call.1} parent=1 // pred_region
      _
    $region9: #{tpu_custom_call.1} parent=1 // pred_fallthru
      _
    // Predicated region
    $region10: #{tpu_custom_call.1} parent=1 // pred_check
      _
    $region11: #{tpu_custom_call.1} parent=1 // pred_check_branch
      %14 = sbr.rel (0) target = $region13
    $region12: #{tpu_custom_call.1} parent=1 // pred_region
      _
    $region13: #{tpu_custom_call.1} parent=1 // pred_fallthru
      _
    %p15 = scmp.eq.s32.totalorder 0, 0
    // Predicated region
    $region14: #{tpu_custom_call.1} parent=1 // pred_check
      %p16 = pneg %p15
    $region15: #{tpu_custom_call.1} parent=1 // pred_check_branch
      %18 = sbr.rel (%p16) target = $region17
    $region16: #{tpu_custom_call.1} parent=1 // pred_region
      %vm19 = vcmask 7168
      %20 = vst.msk [vmem:[#allocation2] sm:$0xff] %vm19, -inf
      %21 = vst.msk [vmem:[#allocation2 + $0x8] sm:$0xff] %vm19, -inf
      %22 = vst.msk [vmem:[#allocation3] sm:$0xff] %vm19, 0.0
      %23 = vst.msk [vmem:[#allocation3 + $0x8] sm:$0xff] %vm19, 0.0
      %24 = vst.msk [vmem:[#allocation4] sm:$0xff] %vm19, 0.0
      %25 = vst.msk [vmem:[#allocation4 + $0x8] sm:$0xff] %vm19, 0.0
      %26 = vst.msk [vmem:[#allocation5] sm:$0xff] %vm19, 0.0
      %27 = vst.msk [vmem:[#allocation5 + $0x8] sm:$0xff] %vm19, 0.0
    $region17: #{tpu_custom_call.1} parent=1 // pred_fallthru
      _
    %v28 = vld [vmem:[%s0] sm:$0xff]
    %v29 = vld [vmem:[%s0 + $0x8] sm:$0xff]
    %v30 = vld [vmem:[%s1] sm:$0xff]
    %v31 = vld [vmem:[%s1 + $0x8] sm:$0xff]
    %s32 = smul.u32 0, 128
    %v33 = vlaneseq
    %v34 = vand.u32 %v33, 127
    %v35 = vstv %s32
    %v36 = vadd.s32 %v35, %v34
    %vm37 = vcmp.lt.s32.totalorder %v36, 20
    %v38 = vld [vmem:[#allocation2] sm:$0xff]
    %v39 = vld [vmem:[#allocation2 + $0x8] sm:$0xff]
    %40 = vmax.xlane.f32.xlu0 %v28
    %v41 = vpop.xlane.xlu0 %40
    %42 = vmax.xlane.f32.xlu0 %v29
    %v43 = vpop.xlane.xlu0 %42
    %v44 = vmax.f32 %v38, %v41
    %v45 = vmax.f32 %v39, %v43
    %v46 = vld [vmem:[#allocation3] sm:$0xff]
    %v47 = vld [vmem:[#allocation3 + $0x8] sm:$0xff]
    %v48 = vsub.f32 %v38, %v44
    %v49 = vsub.f32 %v39, %v45
    %v50 = vmul.f32 %v48, 1.442695
    %v51 = vpow.pop %v50
    %v52 = vmul.f32 %v49, 1.442695
    %v53 = vpow.pop %v52
    %v54 = vmul.f32 %v46, %v51
    %v55 = vmul.f32 %v47, %v53
    %57 = vset.pattern.permute.xlu0 0
    %58 = vperm.xlu0 %57, %v44
    %v59 = vpop.permute.xlu0 %58
    %62 = vset.pattern.permute.xlu0 0
    %63 = vperm.xlu0 %62, %v45
    %v64 = vpop.permute.xlu0 %63
    %v66 = vsub.f32 %v28, %v59
    %v67 = vsub.f32 %v29, %v64
    %v68 = vmul.f32 %v66, 1.442695
    %v69 = vpow.pop %v68
    %v70 = vmul.f32 %v67, 1.442695
    %v71 = vpow.pop %v70
    %72 = vadd.xlane.f32.xlu0 %v69
    %v73 = vpop.xlane.xlu0 %72
    %74 = vadd.xlane.f32.xlu0 %v71
    %v75 = vpop.xlane.xlu0 %74
    %v76 = vadd.f32 %v54, %v73
    %v77 = vadd.f32 %v55, %v75
    %vm78 = vcmask 7168
    %79 = vst.msk [vmem:[#allocation3] sm:$0xff] %vm78, %v76
    %80 = vst.msk [vmem:[#allocation3 + $0x8] sm:$0xff] %vm78, %v77
    %81 = vst.msk [vmem:[#allocation2] sm:$0xff] %vm78, %v44
    %82 = vst.msk [vmem:[#allocation2 + $0x8] sm:$0xff] %vm78, %v45
    %v83 = vld [vmem:[#allocation4] sm:$0xff]
    %v84 = vld [vmem:[#allocation4 + $0x8] sm:$0xff]
    %v85 = vsel %vm37, %v28, 0.0
    %v86 = vsel %vm37, %v29, 0.0
    %87 = vadd.xlane.f32.xlu0 %v85
    %v88 = vpop.xlane.xlu0 %87
    %89 = vadd.xlane.f32.xlu0 %v86
    %v90 = vpop.xlane.xlu0 %89
    %v91 = vadd.f32 %v83, %v88
    %v92 = vadd.f32 %v84, %v90
    %93 = vst.msk [vmem:[#allocation4] sm:$0xff] %vm78, %v91
    %94 = vst.msk [vmem:[#allocation4 + $0x8] sm:$0xff] %vm78, %v92
    %95 = vset.pattern.permute.xlu0 0
    %96 = vperm.xlu0 %95, %v30
    %v97 = vpop.permute.xlu0 %96
    %98 = vset.pattern.permute.xlu0 0
    %99 = vperm.xlu0 %98, %v31
    %v100 = vpop.permute.xlu0 %99
    %vm101 = vcmp.eq.s32.totalorder %v36, %v97
    %vm102 = vcmp.eq.s32.totalorder %v36, %v100
    %v103 = vld [vmem:[#allocation5] sm:$0xff]
    %v104 = vld [vmem:[#allocation5 + $0x8] sm:$0xff]
    %v105 = vsel %vm101, %v28, 0.0
    %v106 = vsel %vm102, %v29, 0.0
    %107 = vadd.xlane.f32.xlu0 %v105
    %v108 = vpop.xlane.xlu0 %107
    %109 = vadd.xlane.f32.xlu0 %v106
    %v110 = vpop.xlane.xlu0 %109
    %v111 = vadd.f32 %v103, %v108
    %v112 = vadd.f32 %v104, %v110
    %113 = vst.msk [vmem:[#allocation5] sm:$0xff] %vm78, %v111
    %114 = vst.msk [vmem:[#allocation5 + $0x8] sm:$0xff] %vm78, %v112
    // Predicated region
    $region18: #{tpu_custom_call.1} parent=1 // pred_check
      %p115 = pneg %p15
    $region19: #{tpu_custom_call.1} parent=1 // pred_check_branch
      %117 = sbr.rel (%p115) target = $region21
    $region20: #{tpu_custom_call.1} parent=1 // pred_region
      %v118 = vld [vmem:[#allocation2] sm:$0xff]
      %v119 = vld [vmem:[#allocation2 + $0x8] sm:$0xff]
      %v120 = vld [vmem:[#allocation3] sm:$0xff]
      %v121 = vld [vmem:[#allocation3 + $0x8] sm:$0xff]
      %v122 = vlog2.pop %v120
      %v123 = vmul.f32 %v122, 0.6931472
      %v124 = vlog2.pop %v121
      %v125 = vmul.f32 %v124, 0.6931472
      %v126 = vadd.f32 %v118, %v123
      %v127 = vadd.f32 %v119, %v125
      %v128 = vld [vmem:[#allocation5] sm:$0xff]
      %v129 = vld [vmem:[#allocation5 + $0x8] sm:$0xff]
      %v130 = vsub.f32 %v126, %v128
      %v131 = vsub.f32 %v127, %v129
      %v132 = vld [vmem:[#allocation4] sm:$0xff]
      %v133 = vld [vmem:[#allocation4 + $0x8] sm:$0xff]
      %v134 = vrcp.pop 20.0
      %v135 = vmul.f32 %v132, %v134
      %v136 = vmul.f32 %v133, %v134
      %v137 = vsub.f32 %v126, %v135
      %v138 = vsub.f32 %v127, %v136
      %v139 = vld [vmem:[%s2] sm:$0xff]
      %v140 = vld [vmem:[%s2 + $0x8] sm:$0xff]
      %v141 = vsub.f32 1.0, %v139
      %v142 = vsub.f32 1.0, %v140
      %v143 = vmul.f32 %v141, %v130
      %v144 = vmul.f32 %v142, %v131
      %v145 = vmul.f32 %v139, %v137
      %v146 = vmul.f32 %v140, %v138
      %v147 = vadd.f32 %v143, %v145
      %v148 = vadd.f32 %v144, %v146
      %s149 = smul.u32 0, 16
      %v150 = vlaneseq
      %v151 = vshrl.u32 %v150, 7
      %v152 = vadd.s32 %v151, 8
      %v153 = vstv %s149
      %v154 = vadd.s32 %v153, %v151
      %v155 = vadd.s32 %v153, %v152
      %vm156 = vcmp.lt.s32.totalorder %v154, 12
      %vm157 = vcmp.lt.s32.totalorder %v155, 12
      %v158 = vsel %vm156, %v147, 0.0
      %v159 = vsel %vm157, %v148, 0.0
      %v160 = vsel %vm78, %v158, 0.0
      %v161 = vsel %vm78, %v159, 0.0
      %v162 = vadd.f32 %v160, %v161
      %163 = vadd.xlane.f32.xlu0 %v162
      %v164 = vpop.xlane.xlu0 %163
      %v165 = vrot.slane %v164, 4
      %v166 = vadd.f32 %v164, %v165
      %v167 = vrot.slane %v166, 2
      %v168 = vadd.f32 %v166, %v167
      %v169 = vrot.slane %v168, 1
      %v170 = vadd.f32 %v168, %v169
      %s171 = vtos %v170
      %v172 = vstv %s171
      %vm173 = vcmask 0
      %174 = vst.msk [vmem:[#allocation6] sm:$0x1] %vm173, %v172
    $region21: #{tpu_custom_call.1} parent=1 // pred_fallthru
      _
    // Predicated region
    $region22: #{tpu_custom_call.1} parent=1 // pred_check
      _
    $region23: #{tpu_custom_call.1} parent=1 // pred_check_branch
      %176 = sbr.rel (0) target = $region25
    $region24: #{tpu_custom_call.1} parent=1 // pred_region
      %s178 = ssub.s32 16, 16
      %179 = vsyncadd [#allocation7], %s178
      %s181 = sshll.u32 [#allocation6], 4
      %s182 = int_to_ptr.vmem [resolvable:$true] %s181
      %184 = dma.vmem_to_hbm [thread:$0]  %s182, 16, %s3, [#allocation7]
    $region25: #{tpu_custom_call.1} parent=1 // pred_fallthru
      _
    // Predicated region
    $region26: #{tpu_custom_call.1} parent=1 // pred_check
      _
    $region27: #{tpu_custom_call.1} parent=1 // pred_check_branch
      %186 = sbr.rel (0) target = $region29
    $region28: #{tpu_custom_call.1} parent=1 // pred_region
      %187 = dma.done [#allocation7], 16
    $region29: #{tpu_custom_call.1} parent=1 // pred_fallthru
      _
    %188 = vsyncpa [#allocation7], 1

</llo_original>
